<compile_context>
chip_gen: v5e
topology: v5e:2x2
jax: 0.10.0
libtpu: 0.0.40
codegen_flags: <defaults>
</compile_context>

<pallas_src>
import numpy as np
import jax
import jax.numpy as jnp
from jax import lax
from jax.experimental import pallas as pl
from jax.experimental.pallas import tpu as pltpu


# ----------------------------- Pallas kernel ------------------------------ #

def _fused_two_conv_kernel(x_ref, w1_ref, w2_ref, s1_ref, s2_ref, o_ref):
    """Fused (3x3 SAME conv + folded BN + ReLU) x 2 for one image.

    x_ref:  (H, W*Cin)             input rows, lane layout (w*Cin + c)
    w1_ref: (3, W*Cin,  W*Cmid)    banded weights (BN scale + horiz. padding
    w2_ref: (3, W*Cmid, W*Cout)    folded in), one band per vertical tap ky
    s1_ref: (1, W*Cmid)            folded BN shift, tiled over w
    s2_ref: (1, W*Cout)
    o_ref:  (H, W*Cout)            lane-dense output
    """
    H = x_ref.shape[0]

    # Exact 0/1 shift matrices for the vertical taps (built once, in vregs):
    #   (s_up @ x)[h] = x[h-1]  (row 0 -> 0)     -> ky = 0 tap
    #   (s_dn @ x)[h] = x[h+1]  (row H-1 -> 0)   -> ky = 2 tap
    # Vertical SAME padding == the zeroed boundary rows, so no masks needed.
    r = lax.broadcasted_iota(jnp.int32, (H, H), 0)
    c = lax.broadcasted_iota(jnp.int32, (H, H), 1)
    s_up = jnp.where(c == r - 1, 1.0, 0.0).astype(jnp.bfloat16)
    s_dn = jnp.where(c == r + 1, 1.0, 0.0).astype(jnp.bfloat16)

    def conv_bn_relu(x_rows, w_ref, shift_ref):
        # bf16 operands -> native MXU; f32 accumulation; 0/1 shift matmuls are
        # exact row selections so they add no rounding error.
        xb = x_rows.astype(jnp.bfloat16)
        x_up = jnp.dot(s_up, xb,
                       preferred_element_type=jnp.float32).astype(jnp.bfloat16)
        x_dn = jnp.dot(s_dn, xb,
                       preferred_element_type=jnp.float32).astype(jnp.bfloat16)
        acc = jnp.dot(x_up, w_ref[0], preferred_element_type=jnp.float32)
        acc = acc + jnp.dot(xb, w_ref[1], preferred_element_type=jnp.float32)
        acc = acc + jnp.dot(x_dn, w_ref[2], preferred_element_type=jnp.float32)
        return jnp.maximum(acc + shift_ref[...], 0.0)        # f32

    y1 = conv_bn_relu(x_ref[...], w1_ref, s1_ref)            # (H, W*Cmid)
    o_ref[...] = conv_bn_relu(y1, w2_ref, s2_ref)            # (H, W*Cout)


def network_partial_forward_packed(x_rows, kp, *, n_images):
    """Packed-layout entry: x_rows is (N*H, W*Cin), rows=(n,h), lanes=(w,c).

    Use this directly when the surrounding graph can keep the packed layout,
    avoiding the NCHW<->NHWC transposes entirely.
    """
    NH, WCin = x_rows.shape
    H = NH // n_images
    WCmid = kp["s1"].shape[1]
    WCout = kp["s2"].shape[1]

    return pl.pallas_call(
        _fused_two_conv_kernel,
        out_shape=jax.ShapeDtypeStruct((NH, WCout), jnp.float32),
        # One image per grid step; "parallel" lets v7x shard the batch across
        # its 2 TensorCores.  Weights/shifts use constant index_maps so they
        # stay resident across steps.  Total VMEM here is a few hundred KB, so
        # no vmem_limit_bytes needed; set it explicitly (and tile W) if the
        # spatial dims ever grow large.
        grid=(n_images,),
        in_specs=[
            pl.BlockSpec((H, WCin), lambda n: (n, 0)),
            pl.BlockSpec((3, WCin, WCmid), lambda n: (0, 0, 0)),
            pl.BlockSpec((3, WCmid, WCout), lambda n: (0, 0, 0)),
            pl.BlockSpec((1, WCmid), lambda n: (0, 0)),
            pl.BlockSpec((1, WCout), lambda n: (0, 0)),
        ],
        out_specs=pl.BlockSpec((H, WCout), lambda n: (n, 0)),
        compiler_params=pltpu.CompilerParams(
            dimension_semantics=("parallel",)),
    )(x_rows, kp["w1b"], kp["w2b"], kp["s1"], kp["s2"])


def network_partial_forward(x_nchw, kp):
    """Equivalent of network_partial.forward (two conv->BN->ReLU). NCHW in/out."""
    N, Cin, H, W = x_nchw.shape
    Cout = kp["s2"].shape[1] // W

    # NCHW -> NHWC -> (N*H, W*Cin): rows = (n, h), lanes = (w, c).
    x = jnp.transpose(x_nchw, (0, 2, 3, 1)).reshape(N * H, W * Cin)
    out2d = network_partial_forward_packed(x, kp, n_images=N)
    out = out2d.reshape(N, H, W, Cout)
    return jnp.transpose(out, (0, 3, 1, 2))                  # NHWC -> NCHW


# ----------------------- parameter folding / banding ----------------------- #

def _fold_bn(w, b, gamma, beta, mean, var, eps=1e-5):
    """Fold eval-mode BN into conv weights + per-channel shift."""
    scale = gamma / jnp.sqrt(var + eps)
    return w * scale[None, None, None, :], beta + (b - mean) * scale


def _band_conv_weights(w_hwio, W):
    """(3,3,Cin,Cout) -> (3, W*Cin, W*Cout) banded matrices (one per ky).

    Horizontal SAME padding is folded in: out-of-range taps are zero bands, so
    the matmul runs directly on the unpadded (rows, W*Cin) activations.
      B[ky, wp*Cin + ci, w*Cout + co] = w[ky, wp - w + 1, ci, co]
    for wp = w + kx - 1 in [0, W), else 0.
    """
    w_np = np.asarray(w_hwio, np.float32)
    Cin, Cout = w_np.shape[2], w_np.shape[3]
    B = np.zeros((3, W * Cin, W * Cout), np.float32)
    for ky in range(3):
        for kx in range(3):
            for wc in range(W):
                wp = wc + kx - 1
                if 0 <= wp < W:
                    B[ky, wp * Cin:(wp + 1) * Cin,
                      wc * Cout:(wc + 1) * Cout] = w_np[ky, kx]
    return B


def make_raw_params(key, cin=4, cmid=8, cout=8):
    ks = jax.random.split(key, 12)

    def conv_w(k, ci, co):
        fan_in = ci * 9
        return (jax.random.normal(k, (3, 3, ci, co), jnp.float32)
                * jnp.sqrt(2.0 / fan_in))

    raw = {
        "w1": conv_w(ks[0], cin, cmid),
        "b1": 0.05 * jax.random.normal(ks[1], (cmid,), jnp.float32),
        "g1": 1.0 + 0.1 * jax.random.normal(ks[2], (cmid,), jnp.float32),
        "be1": 0.1 * jax.random.normal(ks[3], (cmid,), jnp.float32),
        "m1": 0.1 * jax.random.normal(ks[4], (cmid,), jnp.float32),
        "v1": 1.0 + 0.1 * jnp.abs(jax.random.normal(ks[5], (cmid,), jnp.float32)),
        "w2": conv_w(ks[6], cmid, cout),
        "b2": 0.05 * jax.random.normal(ks[7], (cout,), jnp.float32),
        "g2": 1.0 + 0.1 * jax.random.normal(ks[8], (cout,), jnp.float32),
        "be2": 0.1 * jax.random.normal(ks[9], (cout,), jnp.float32),
        "m2": 0.1 * jax.random.normal(ks[10], (cout,), jnp.float32),
        "v2": 1.0 + 0.1 * jnp.abs(jax.random.normal(ks[11], (cout,), jnp.float32)),
    }
    return raw


def prepare_kernel_params(raw, W, eps=1e-5):
    """Fold BN, band the conv weights (horizontal padding included), cast to
    bf16 for the MXU; shifts stay f32 and are tiled to the (w, c) lane layout."""
    w1f, shift1 = _fold_bn(raw["w1"], raw["b1"], raw["g1"], raw["be1"],
                           raw["m1"], raw["v1"], eps)
    w2f, shift2 = _fold_bn(raw["w2"], raw["b2"], raw["g2"], raw["be2"],
                           raw["m2"], raw["v2"], eps)
    cmid, cout = w1f.shape[-1], w2f.shape[-1]
    return {
        "w1b": jnp.asarray(_band_conv_weights(w1f, W), jnp.bfloat16),
        "w2b": jnp.asarray(_band_conv_weights(w2f, W), jnp.bfloat16),
        "s1": jnp.tile(shift1, W).reshape(1, W * cmid).astype(jnp.float32),
        "s2": jnp.tile(shift2, W).reshape(1, W * cout).astype(jnp.float32),
    }


# ------------------------------ reference ---------------------------------- #

def _ref_layer(x_nhwc, w, b, g, be, m, v, eps=1e-5):
    y = jax.lax.conv_general_dilated(
        x_nhwc, w, window_strides=(1, 1), padding="SAME",
        dimension_numbers=("NHWC", "HWIO", "NHWC")) + b
    y = (y - m) / jnp.sqrt(v + eps) * g + be                  # eval-mode BN
    return jnp.maximum(y, 0.0)


def network_partial_reference(x_nchw, raw, eps=1e-5):
    x = jnp.transpose(x_nchw, (0, 2, 3, 1))
    x = _ref_layer(x, raw["w1"], raw["b1"], raw["g1"], raw["be1"],
                   raw["m1"], raw["v1"], eps)
    x = _ref_layer(x, raw["w2"], raw["b2"], raw["g2"], raw["be2"],
                   raw["m2"], raw["v2"], eps)
    return jnp.transpose(x, (0, 3, 1, 2))


# --------------------------------- main ------------------------------------ #

if __name__ == "__main__":
    key = jax.random.PRNGKey(0)
    kx, kparam = jax.random.split(key)

    # PyTorch-style NCHW input: batch=2, channels=4, spatial=16x16.
    x = jax.random.normal(kx, (2, 4, 16, 16), jnp.float32)

    raw = make_raw_params(kparam, cin=4, cmid=8, cout=8)
    kp = prepare_kernel_params(raw, W=x.shape[3])             # done once, host-side

    fwd = jax.jit(network_partial_forward)
    out = jax.block_until_ready(fwd(x, kp))

    ref = network_partial_reference(x, raw)                   # f32 reference
    assert out.shape == (2, 8, 16, 16), out.shape
    max_err = float(jnp.max(jnp.abs(out - ref)))
    # Matmul operands are bf16 (f32 accumulation), so allow bf16-level error
    # vs the f32 reference.
    assert jnp.allclose(out, ref, rtol=2e-2, atol=4e-2), f"max abs err {max_err}"

    print("KERNEL_OK")
</pallas_src>

<mosaic_0001>
module attributes {stable_mosaic.version = 11 : i64} {
  func.func @_fused_two_conv_kernel(%arg0: i32, %arg1: memref<16x64xf32, #tpu.memory_space<vmem>>, %arg2: memref<3x64x128xbf16, #tpu.memory_space<vmem>>, %arg3: memref<3x128x128xbf16, #tpu.memory_space<vmem>>, %arg4: memref<1x128xf32, #tpu.memory_space<vmem>>, %arg5: memref<1x128xf32, #tpu.memory_space<vmem>>, %arg6: memref<16x128xf32, #tpu.memory_space<vmem>>) attributes {dimension_semantics = [#tpu.dimension_semantics<parallel>], iteration_bounds = array<i64: 2>, scalar_prefetch = 0 : i64, scratch_operands = 0 : i64, tpu.core_type = #tpu.core_type<tc>, window_params = [{transform_indices = @transform_0, window_bounds = array<i64: 16, 64>}, {pipeline_mode = #tpu.pipeline_mode<synchronous>, transform_indices = @transform_1, window_bounds = array<i64: 3, 64, 128>}, {pipeline_mode = #tpu.pipeline_mode<synchronous>, transform_indices = @transform_2, window_bounds = array<i64: 3, 128, 128>}, {pipeline_mode = #tpu.pipeline_mode<synchronous>, transform_indices = @transform_3, window_bounds = array<i64: 1, 128>}, {pipeline_mode = #tpu.pipeline_mode<synchronous>, transform_indices = @transform_4, window_bounds = array<i64: 1, 128>}, {transform_indices = @transform_5, window_bounds = array<i64: 16, 128>}]} {
    %0 = tpu.iota {dimensions = array<i32: 0>} : vector<16x16xi32>
    %1 = tpu.iota {dimensions = array<i32: 1>} : vector<16x16xi32>
    %c1_i32 = arith.constant 1 : i32
    %2 = vector.broadcast %c1_i32 : i32 to vector<16x16xi32>
    %3 = arith.subi %0, %2 : vector<16x16xi32>
    %4 = arith.cmpi eq, %1, %3 : vector<16x16xi32>
    %cst = arith.constant 1.000000e+00 : f32
    %cst_0 = arith.constant 0.000000e+00 : f32
    %5 = vector.broadcast %cst : f32 to vector<16x16xf32>
    %6 = vector.broadcast %cst_0 : f32 to vector<16x16xf32>
    %7 = arith.select %4, %5, %6 : vector<16x16xi1>, vector<16x16xf32>
    %8 = arith.truncf %7 : vector<16x16xf32> to vector<16x16xbf16>
    %c1_i32_1 = arith.constant 1 : i32
    %9 = vector.broadcast %c1_i32_1 : i32 to vector<16x16xi32>
    %10 = arith.addi %0, %9 : vector<16x16xi32>
    %11 = arith.cmpi eq, %1, %10 : vector<16x16xi32>
    %cst_2 = arith.constant 1.000000e+00 : f32
    %cst_3 = arith.constant 0.000000e+00 : f32
    %12 = vector.broadcast %cst_2 : f32 to vector<16x16xf32>
    %13 = vector.broadcast %cst_3 : f32 to vector<16x16xf32>
    %14 = arith.select %11, %12, %13 : vector<16x16xi1>, vector<16x16xf32>
    %15 = arith.truncf %14 : vector<16x16xf32> to vector<16x16xbf16>
    %c0 = arith.constant 0 : index
    %c0_4 = arith.constant 0 : index
    %16 = vector.load %arg1[%c0, %c0_4] : memref<16x64xf32, #tpu.memory_space<vmem>>, vector<16x64xf32>
    %17 = arith.truncf %16 : vector<16x64xf32> to vector<16x64xbf16>
    %cst_5 = arith.constant dense<0.000000e+00> : vector<16x64xf32>
    %18 = tpu.matmul %8, %17, %cst_5 {dimension_numbers = #tpu.dot_dimension_numbers<[1], [0], [0], [1], [0, 0, 1, 1], [], []>} : vector<16x16xbf16>, vector<16x64xbf16>, vector<16x64xf32> -> vector<16x64xf32>
    %19 = arith.truncf %18 : vector<16x64xf32> to vector<16x64xbf16>
    %cst_6 = arith.constant dense<0.000000e+00> : vector<16x64xf32>
    %20 = tpu.matmul %15, %17, %cst_6 {dimension_numbers = #tpu.dot_dimension_numbers<[1], [0], [0], [1], [0, 0, 1, 1], [], []>} : vector<16x16xbf16>, vector<16x64xbf16>, vector<16x64xf32> -> vector<16x64xf32>
    %21 = arith.truncf %20 : vector<16x64xf32> to vector<16x64xbf16>
    %c0_7 = arith.constant 0 : index
    %c0_8 = arith.constant 0 : index
    %c0_9 = arith.constant 0 : index
    %22 = vector.load %arg2[%c0_7, %c0_8, %c0_9] : memref<3x64x128xbf16, #tpu.memory_space<vmem>>, vector<1x64x128xbf16>
    %23 = vector.shape_cast %22 : vector<1x64x128xbf16> to vector<64x128xbf16>
    %cst_10 = arith.constant dense<0.000000e+00> : vector<16x128xf32>
    %24 = tpu.matmul %19, %23, %cst_10 {dimension_numbers = #tpu.dot_dimension_numbers<[1], [0], [0], [1], [0, 0, 1, 1], [], []>} : vector<16x64xbf16>, vector<64x128xbf16>, vector<16x128xf32> -> vector<16x128xf32>
    %c1 = arith.constant 1 : index
    %c0_11 = arith.constant 0 : index
    %c0_12 = arith.constant 0 : index
    %25 = vector.load %arg2[%c1, %c0_11, %c0_12] : memref<3x64x128xbf16, #tpu.memory_space<vmem>>, vector<1x64x128xbf16>
    %26 = vector.shape_cast %25 : vector<1x64x128xbf16> to vector<64x128xbf16>
    %cst_13 = arith.constant dense<0.000000e+00> : vector<16x128xf32>
    %27 = tpu.matmul %17, %26, %cst_13 {dimension_numbers = #tpu.dot_dimension_numbers<[1], [0], [0], [1], [0, 0, 1, 1], [], []>} : vector<16x64xbf16>, vector<64x128xbf16>, vector<16x128xf32> -> vector<16x128xf32>
    %28 = arith.addf %24, %27 : vector<16x128xf32>
    %c2 = arith.constant 2 : index
    %c0_14 = arith.constant 0 : index
    %c0_15 = arith.constant 0 : index
    %29 = vector.load %arg2[%c2, %c0_14, %c0_15] : memref<3x64x128xbf16, #tpu.memory_space<vmem>>, vector<1x64x128xbf16>
    %30 = vector.shape_cast %29 : vector<1x64x128xbf16> to vector<64x128xbf16>
    %cst_16 = arith.constant dense<0.000000e+00> : vector<16x128xf32>
    %31 = tpu.matmul %21, %30, %cst_16 {dimension_numbers = #tpu.dot_dimension_numbers<[1], [0], [0], [1], [0, 0, 1, 1], [], []>} : vector<16x64xbf16>, vector<64x128xbf16>, vector<16x128xf32> -> vector<16x128xf32>
    %32 = arith.addf %28, %31 : vector<16x128xf32>
    %c0_17 = arith.constant 0 : index
    %c0_18 = arith.constant 0 : index
    %33 = vector.load %arg4[%c0_17, %c0_18] : memref<1x128xf32, #tpu.memory_space<vmem>>, vector<1x128xf32>
    %34 = vector.broadcast %33 : vector<1x128xf32> to vector<16x128xf32>
    %35 = arith.addf %32, %34 : vector<16x128xf32>
    %cst_19 = arith.constant 0.000000e+00 : f32
    %36 = vector.broadcast %cst_19 : f32 to vector<16x128xf32>
    %37 = arith.maximumf %35, %36 : vector<16x128xf32>
    %38 = arith.truncf %37 : vector<16x128xf32> to vector<16x128xbf16>
    %cst_20 = arith.constant dense<0.000000e+00> : vector<16x128xf32>
    %39 = tpu.matmul %8, %38, %cst_20 {dimension_numbers = #tpu.dot_dimension_numbers<[1], [0], [0], [1], [0, 0, 1, 1], [], []>} : vector<16x16xbf16>, vector<16x128xbf16>, vector<16x128xf32> -> vector<16x128xf32>
    %40 = arith.truncf %39 : vector<16x128xf32> to vector<16x128xbf16>
    %cst_21 = arith.constant dense<0.000000e+00> : vector<16x128xf32>
    %41 = tpu.matmul %15, %38, %cst_21 {dimension_numbers = #tpu.dot_dimension_numbers<[1], [0], [0], [1], [0, 0, 1, 1], [], []>} : vector<16x16xbf16>, vector<16x128xbf16>, vector<16x128xf32> -> vector<16x128xf32>
    %42 = arith.truncf %41 : vector<16x128xf32> to vector<16x128xbf16>
    %c0_22 = arith.constant 0 : index
    %c0_23 = arith.constant 0 : index
    %c0_24 = arith.constant 0 : index
    %43 = vector.load %arg3[%c0_22, %c0_23, %c0_24] : memref<3x128x128xbf16, #tpu.memory_space<vmem>>, vector<1x128x128xbf16>
    %44 = vector.shape_cast %43 : vector<1x128x128xbf16> to vector<128x128xbf16>
    %cst_25 = arith.constant dense<0.000000e+00> : vector<16x128xf32>
    %45 = tpu.matmul %40, %44, %cst_25 {dimension_numbers = #tpu.dot_dimension_numbers<[1], [0], [0], [1], [0, 0, 1, 1], [], []>} : vector<16x128xbf16>, vector<128x128xbf16>, vector<16x128xf32> -> vector<16x128xf32>
    %c1_26 = arith.constant 1 : index
    %c0_27 = arith.constant 0 : index
    %c0_28 = arith.constant 0 : index
    %46 = vector.load %arg3[%c1_26, %c0_27, %c0_28] : memref<3x128x128xbf16, #tpu.memory_space<vmem>>, vector<1x128x128xbf16>
    %47 = vector.shape_cast %46 : vector<1x128x128xbf16> to vector<128x128xbf16>
    %cst_29 = arith.constant dense<0.000000e+00> : vector<16x128xf32>
    %48 = tpu.matmul %38, %47, %cst_29 {dimension_numbers = #tpu.dot_dimension_numbers<[1], [0], [0], [1], [0, 0, 1, 1], [], []>} : vector<16x128xbf16>, vector<128x128xbf16>, vector<16x128xf32> -> vector<16x128xf32>
    %49 = arith.addf %45, %48 : vector<16x128xf32>
    %c2_30 = arith.constant 2 : index
    %c0_31 = arith.constant 0 : index
    %c0_32 = arith.constant 0 : index
    %50 = vector.load %arg3[%c2_30, %c0_31, %c0_32] : memref<3x128x128xbf16, #tpu.memory_space<vmem>>, vector<1x128x128xbf16>
    %51 = vector.shape_cast %50 : vector<1x128x128xbf16> to vector<128x128xbf16>
    %cst_33 = arith.constant dense<0.000000e+00> : vector<16x128xf32>
    %52 = tpu.matmul %42, %51, %cst_33 {dimension_numbers = #tpu.dot_dimension_numbers<[1], [0], [0], [1], [0, 0, 1, 1], [], []>} : vector<16x128xbf16>, vector<128x128xbf16>, vector<16x128xf32> -> vector<16x128xf32>
    %53 = arith.addf %49, %52 : vector<16x128xf32>
    %c0_34 = arith.constant 0 : index
    %c0_35 = arith.constant 0 : index
    %54 = vector.load %arg5[%c0_34, %c0_35] : memref<1x128xf32, #tpu.memory_space<vmem>>, vector<1x128xf32>
    %55 = vector.broadcast %54 : vector<1x128xf32> to vector<16x128xf32>
    %56 = arith.addf %53, %55 : vector<16x128xf32>
    %cst_36 = arith.constant 0.000000e+00 : f32
    %57 = vector.broadcast %cst_36 : f32 to vector<16x128xf32>
    %58 = arith.maximumf %56, %57 : vector<16x128xf32>
    %c0_37 = arith.constant 0 : index
    %c0_38 = arith.constant 0 : index
    %59 = vector.load %arg6[%c0_37, %c0_38] : memref<16x128xf32, #tpu.memory_space<vmem>>, vector<16x128xf32>
    tpu.vector_store %arg6[%c0_37, %c0_38], %58 {strides = array<i32>} : memref<16x128xf32, #tpu.memory_space<vmem>>, vector<16x128xf32>,
    return
  }
  func.func @transform_0(%arg0: i32) -> (i32, i32) {
    %c0_i32 = arith.constant 0 : i32
    %c0_i32_0 = arith.constant 0 : i32
    return %arg0, %c0_i32 : i32, i32
  }
  func.func @transform_1(%arg0: i32) -> (i32, i32, i32) {
    %c0_i32 = arith.constant 0 : i32
    %c0_i32_0 = arith.constant 0 : i32
    %c0_i32_1 = arith.constant 0 : i32
    %c0_i32_2 = arith.constant 0 : i32
    return %c0_i32, %c0_i32_0, %c0_i32_1 : i32, i32, i32
  }
  func.func @transform_2(%arg0: i32) -> (i32, i32, i32) {
    %c0_i32 = arith.constant 0 : i32
    %c0_i32_0 = arith.constant 0 : i32
    %c0_i32_1 = arith.constant 0 : i32
    %c0_i32_2 = arith.constant 0 : i32
    return %c0_i32, %c0_i32_0, %c0_i32_1 : i32, i32, i32
  }
  func.func @transform_3(%arg0: i32) -> (i32, i32) {
    %c0_i32 = arith.constant 0 : i32
    %c0_i32_0 = arith.constant 0 : i32
    %c0_i32_1 = arith.constant 0 : i32
    return %c0_i32, %c0_i32_0 : i32, i32
  }
  func.func @transform_4(%arg0: i32) -> (i32, i32) {
    %c0_i32 = arith.constant 0 : i32
    %c0_i32_0 = arith.constant 0 : i32
    %c0_i32_1 = arith.constant 0 : i32
    return %c0_i32, %c0_i32_0 : i32, i32
  }
  func.func @transform_5(%arg0: i32) -> (i32, i32) {
    %c0_i32 = arith.constant 0 : i32
    %c0_i32_0 = arith.constant 0 : i32
    return %arg0, %c0_i32 : i32, i32
  }
}

</mosaic_0001>

<llo_original>
// kernel: network_partial_forward.1
$region0: #{network_partial_forward.1}
  #allocation0 [shape = 'u32[]', space=smem, size = 0x4, offset = 0x4, fixed_abs, tag = 'smem constant byte address 0x4 - core index']
  #allocation1 [shape = 'u32[72,128]{1,0:T(1,128)}', space=vmem, size = 0x9000, scoped, tag = 'internal scratch']
  %s0 = inlined_call_operand.vmem [shape: f32[32,64], index: 0, kind: input, shape index: {}]
  %s1 = inlined_call_operand.vmem [shape: bf16[3,64,128], index: 1, kind: input, shape index: {}]
  %s2 = inlined_call_operand.vmem [shape: bf16[3,128,128], index: 2, kind: input, shape index: {}]
  %s3 = inlined_call_operand.vmem [shape: f32[1,128], index: 3, kind: input, shape index: {}]
  %s4 = inlined_call_operand.vmem [shape: f32[1,128], index: 4, kind: input, shape index: {}]
  %s5 = inlined_call_operand.vmem [shape: f32[32,128], index: 5, kind: output, shape index: {}]
  %s6 = sld [smem:[#allocation0]]
  $region53: #{network_partial_forward.1} parent=0
    _
  %s8 = ssub.s32 1, %s6
  %s9 = scalar_select 0, %s8, %s6
  loop: start=0, step=1, limit=4
  $region2: #{network_partial_forward.1} parent=0 // loop_pre_header
    _
  $region3: #{network_partial_forward.1} parent=0 // loop_header
    %s11 = sphi 0, %s15
    %p12 = scmp.ge.s32.totalorder %s11, 4
    %s21 = sphi 0, %s23
    %s24 = sphi 0, %s21
    %s25 = sphi 0, %s24
    %s41 = sphi 0, %s25
    %s45 = sphi 0, %s45
    %s47 = sphi 0, %s45
    %s48 = sphi 0, %s47
    %s62 = sphi 0, %s48
    %s66 = sphi 0, %s66
    %s68 = sphi 0, %s66
    %s69 = sphi 0, %s68
    %s83 = sphi 0, %s69
    %s87 = sphi 0, %s87
    %s89 = sphi 0, %s87
    %s90 = sphi 0, %s89
    %s104 = sphi 0, %s90
    %s108 = sphi 0, %s108
    %s110 = sphi 0, %s108
    %s111 = sphi 0, %s110
    %s125 = sphi 0, %s111
    %s131 = sphi 0, %s133
    %s134 = sphi 0, %s131
    %s135 = sphi 0, %s134
    %s151 = sphi 0, %s135
  $region4: #{network_partial_forward.1} parent=0 // loop_header_branch
    %14 = sbr.rel (%p12) target = $region8
  $region5: #{network_partial_forward.1} parent=0 // loop_body
    %s16 = ssub.s32 %s11, 1
    %s17 = ssub.s32 %s11, 2
    %s18 = sadd.s32 %s11, 1
    %s19 = ssub.s32 %s11, %s18
    %p20 = scmp.eq.s32.totalorder %s19, 0
    %s22 = sadd.s32 %s21, 1
    %s23 = scalar_select %p20, %s21, %s22
    %p26 = pneg %p20
    %p27 = scmp.eq.s32.totalorder %s11, 1
    %p28 = por %p26, %p27
    %p29 = scmp.ne.s32.totalorder %s21, %s24
    %p30 = scmp.eq.s32.totalorder %s11, 0
    %p31 = por %p29, %p30
    %p32 = scmp.ne.s32.totalorder %s21, %s24
    %p33 = scmp.eq.s32.totalorder %s16, 1
    %p34 = por %p32, %p33
    %p35 = scmp.ne.s32.totalorder %s24, %s25
    %p36 = scmp.eq.s32.totalorder %s16, 0
    %p37 = por %p35, %p36
    %p38 = scmp.ne.s32.totalorder %s24, %s25
    %p39 = scmp.eq.s32.totalorder %s17, 1
    %p40 = por %p38, %p39
    %p42 = scmp.ne.s32.totalorder %s25, %s41
    %p43 = scmp.eq.s32.totalorder %s17, 0
    %p44 = por %p42, %p43
    %s46 = sadd.s32 %s45, 1
    %p49 = scmp.eq.s32.totalorder %s11, 1
    %p50 = scmp.ne.s32.totalorder %s45, %s47
    %p51 = scmp.eq.s32.totalorder %s11, 0
    %p52 = por %p50, %p51
    %p53 = scmp.ne.s32.totalorder %s45, %s47
    %p54 = scmp.eq.s32.totalorder %s16, 1
    %p55 = por %p53, %p54
    %p56 = scmp.ne.s32.totalorder %s47, %s48
    %p57 = scmp.eq.s32.totalorder %s16, 0
    %p58 = por %p56, %p57
    %p59 = scmp.ne.s32.totalorder %s47, %s48
    %p60 = scmp.eq.s32.totalorder %s17, 1
    %p61 = por %p59, %p60
    %p63 = scmp.ne.s32.totalorder %s48, %s62
    %p64 = scmp.eq.s32.totalorder %s17, 0
    %p65 = por %p63, %p64
    %s67 = sadd.s32 %s66, 1
    %p70 = scmp.eq.s32.totalorder %s11, 1
    %p71 = scmp.ne.s32.totalorder %s66, %s68
    %p72 = scmp.eq.s32.totalorder %s11, 0
    %p73 = por %p71, %p72
    %p74 = scmp.ne.s32.totalorder %s66, %s68
    %p75 = scmp.eq.s32.totalorder %s16, 1
    %p76 = por %p74, %p75
    %p77 = scmp.ne.s32.totalorder %s68, %s69
    %p78 = scmp.eq.s32.totalorder %s16, 0
    %p79 = por %p77, %p78
    %p80 = scmp.ne.s32.totalorder %s68, %s69
    %p81 = scmp.eq.s32.totalorder %s17, 1
    %p82 = por %p80, %p81
    %p84 = scmp.ne.s32.totalorder %s69, %s83
    %p85 = scmp.eq.s32.totalorder %s17, 0
    %p86 = por %p84, %p85
    %s88 = sadd.s32 %s87, 1
    %p91 = scmp.eq.s32.totalorder %s11, 1
    %p92 = scmp.ne.s32.totalorder %s87, %s89
    %p93 = scmp.eq.s32.totalorder %s11, 0
    %p94 = por %p92, %p93
    %p95 = scmp.ne.s32.totalorder %s87, %s89
    %p96 = scmp.eq.s32.totalorder %s16, 1
    %p97 = por %p95, %p96
    %p98 = scmp.ne.s32.totalorder %s89, %s90
    %p99 = scmp.eq.s32.totalorder %s16, 0
    %p100 = por %p98, %p99
    %p101 = scmp.ne.s32.totalorder %s89, %s90
    %p102 = scmp.eq.s32.totalorder %s17, 1
    %p103 = por %p101, %p102
    %p105 = scmp.ne.s32.totalorder %s90, %s104
    %p106 = scmp.eq.s32.totalorder %s17, 0
    %p107 = por %p105, %p106
    %s109 = sadd.s32 %s108, 1
    %p112 = scmp.eq.s32.totalorder %s11, 1
    %p113 = scmp.ne.s32.totalorder %s108, %s110
    %p114 = scmp.eq.s32.totalorder %s11, 0
    %p115 = por %p113, %p114
    %p116 = scmp.ne.s32.totalorder %s108, %s110
    %p117 = scmp.eq.s32.totalorder %s16, 1
    %p118 = por %p116, %p117
    %p119 = scmp.ne.s32.totalorder %s110, %s111
    %p120 = scmp.eq.s32.totalorder %s16, 0
    %p121 = por %p119, %p120
    %p122 = scmp.ne.s32.totalorder %s110, %s111
    %p123 = scmp.eq.s32.totalorder %s17, 1
    %p124 = por %p122, %p123
    %p126 = scmp.ne.s32.totalorder %s111, %s125
    %p127 = scmp.eq.s32.totalorder %s17, 0
    %p128 = por %p126, %p127
    %s129 = ssub.s32 %s11, %s18
    %p130 = scmp.eq.s32.totalorder %s129, 0
    %s132 = sadd.s32 %s131, 1
    %s133 = scalar_select %p130, %s131, %s132
    %p136 = pneg %p130
    %p137 = scmp.eq.s32.totalorder %s11, 1
    %p138 = por %p136, %p137
    %p139 = scmp.ne.s32.totalorder %s131, %s134
    %p140 = scmp.eq.s32.totalorder %s11, 0
    %p141 = por %p139, %p140
    %p142 = scmp.ne.s32.totalorder %s131, %s134
    %p143 = scmp.eq.s32.totalorder %s16, 1
    %p144 = por %p142, %p143
    %p145 = scmp.ne.s32.totalorder %s134, %s135
    %p146 = scmp.eq.s32.totalorder %s16, 0
    %p147 = por %p145, %p146
    %p148 = scmp.ne.s32.totalorder %s134, %s135
    %p149 = scmp.eq.s32.totalorder %s17, 1
    %p150 = por %p148, %p149
    %p152 = scmp.ne.s32.totalorder %s135, %s151
    %p153 = scmp.eq.s32.totalorder %s17, 0
    %p154 = por %p152, %p153
    %p155 = scmp.le.s32.totalorder 1, %s11
    %p156 = scmp.lt.s32.totalorder %s11, 3
    %p157 = pnand %p155, %p156
    %p158 = pneg %p157
    // Predicated region
    $region9: #{network_partial_forward.1} parent=5 // pred_check
      _
    $region10: #{network_partial_forward.1} parent=5 // pred_check_branch
      %160 = sbr.rel (%p157) target = $region12
    $region11: #{network_partial_forward.1} parent=5 // pred_region
      %s161 = ssub.s32 %s11, 1
      // Predicated region
      $region13: #{network_partial_forward.1} parent=11 // pred_check
        %p162 = pneg %p58
      $region14: #{network_partial_forward.1} parent=11 // pred_check_branch
        %164 = sbr.rel (%p162) target = $region16
      $region15: #{network_partial_forward.1} parent=11 // pred_region
        _
      $region16: #{network_partial_forward.1} parent=11 // pred_fallthru
        _
      // Predicated region
      $region17: #{network_partial_forward.1} parent=11 // pred_check
        %p165 = pneg %p79
      $region18: #{network_partial_forward.1} parent=11 // pred_check_branch
        %167 = sbr.rel (%p165) target = $region20
      $region19: #{network_partial_forward.1} parent=11 // pred_region
        _
      $region20: #{network_partial_forward.1} parent=11 // pred_fallthru
        _
      // Predicated region
      $region21: #{network_partial_forward.1} parent=11 // pred_check
        %p168 = pneg %p100
      $region22: #{network_partial_forward.1} parent=11 // pred_check_branch
        %170 = sbr.rel (%p168) target = $region24
      $region23: #{network_partial_forward.1} parent=11 // pred_region
        _
      $region24: #{network_partial_forward.1} parent=11 // pred_fallthru
        _
      // Predicated region
      $region25: #{network_partial_forward.1} parent=11 // pred_check
        %p171 = pneg %p121
      $region26: #{network_partial_forward.1} parent=11 // pred_check_branch
        %173 = sbr.rel (%p171) target = $region28
      $region27: #{network_partial_forward.1} parent=11 // pred_region
        _
      $region28: #{network_partial_forward.1} parent=11 // pred_fallthru
        _
    $region12: #{network_partial_forward.1} parent=5 // pred_fallthru
      _
    %p174 = scmp.lt.s32.totalorder %s11, 2
    // Predicated region
    $region29: #{network_partial_forward.1} parent=5 // pred_check
      %p175 = pneg %p174
    $region30: #{network_partial_forward.1} parent=5 // pred_check_branch
      %177 = sbr.rel (%p175) target = $region32
    $region31: #{network_partial_forward.1} parent=5 // pred_region
      // Predicated region
      $region33: #{network_partial_forward.1} parent=31 // pred_check
        %p178 = pneg %p31
      $region34: #{network_partial_forward.1} parent=31 // pred_check_branch
        %180 = sbr.rel (%p178) target = $region36
      $region35: #{network_partial_forward.1} parent=31 // pred_region
        %s181 = smul.u32 2, %s11
        %p182 = scmp.lt.s32.totalorder %s181, 3
        %s183 = scalar_select %p182, %s181, 3
        %s184 = smul.addr %s183, 8
        %s185 = scalar_lea.vmem %s0, %s184
        %s186 = smul.u32 2, %s11
      $region36: #{network_partial_forward.1} parent=31 // pred_fallthru
        _
    $region32: #{network_partial_forward.1} parent=5 // pred_fallthru
      _
    %p187 = scmp.le.s32.totalorder 1, %s11
    %p188 = scmp.lt.s32.totalorder %s11, 3
    %p189 = pnand %p187, %p188
    %p190 = pneg %p189
    // Predicated region
    $region37: #{network_partial_forward.1} parent=5 // pred_check
      _
    $region38: #{network_partial_forward.1} parent=5 // pred_check_branch
      %192 = sbr.rel (%p189) target = $region40
    $region39: #{network_partial_forward.1} parent=5 // pred_region
      %s193 = ssub.s32 %s11, 1
      %s194 = smul.u32 2, %s16
      %p195 = scmp.lt.s32.totalorder %s194, 3
      %s196 = scalar_select %p195, %s194, 3
      %s197 = smul.addr %s196, 8
      %s198 = scalar_lea.vmem %s0, %s197
      %p199 = pneg %p37
      %p200 = pneg %p34
      %p201 = pneg %p58
      %p202 = pneg %p55
      %p203 = pneg %p79
      %p204 = pneg %p76
      %p205 = pneg %p100
      %p206 = pneg %p97
      %p207 = pneg %p121
      %p208 = pneg %p118
      %p209 = pneg %p147
      %p210 = pneg %p144
      %s211 = smul.u32 2, %s16
      %p212 = scmp.lt.s32.totalorder %s211, 3
      %s213 = scalar_select %p212, %s211, 3
      %s214 = smul.addr %s213, 8
      %s215 = scalar_lea.vmem %s5, %s214
      %s216 = smul.u32 2, %s16
      %p217 = scmp.lt.s32.totalorder %s216, 3
      %s218 = scalar_select %p217, %s216, 3
      %s219 = smul.addr %s218, 8
      %s220 = scalar_lea.vmem %s0, %s219
      %s221 = smul.u32 2, %s16
      %s222 = smul.u32 2, %s16
      %p223 = scmp.lt.s32.totalorder %s222, 3
      %s224 = scalar_select %p223, %s222, 3
      %s225 = smul.addr %s224, 8
      %s226 = scalar_lea.vmem %s5, %s225
      %s227 = smul.u32 2, %s16
      %v229 = vlaneseq
      %v230 = vshrl.u32 %v229, 7
      %v231 = vadd.s32 %v230, 8
      %v232 = vlaneseq
      %v233 = vand.u32 %v232, 127
      %v234 = vsub.s32 %v230, 1
      %v235 = vsub.s32 %v231, 1
      %vm236 = vcmp.eq.s32.totalorder %v233, %v234
      %vm237 = vcmp.eq.s32.totalorder %v233, %v235
      %v238 = vsel %vm236, 1.0, 0.0
      %v239 = vsel %vm237, 1.0, 0.0
      %v240 = vpack.c.bf16 %v239, %v238
      %v241 = vadd.s32 %v230, 1
      %v242 = vadd.s32 %v231, 1
      %vm243 = vcmp.eq.s32.totalorder %v233, %v241
      %vm244 = vcmp.eq.s32.totalorder %v233, %v242
      %v245 = vsel %vm243, 1.0, 0.0
      %v246 = vsel %vm244, 1.0, 0.0
      %v247 = vpack.c.bf16 %v246, %v245
      %v248 = vld [vmem:[%s220] sm:$0xff]
      %v249 = vld [vmem:[%s220 + $0x8] sm:$0xff]
      %v250 = vpack.c.bf16 %v249, %v248
      %vm251 = vcmask 130048
      %v253 = vsel %vm251, %v240, 0
      %255 = vmatpush.bf16.msra.mxu0 0
      %256 = vmatpush.bf16.msra.mxu0 0
      %257 = vmatpush.bf16.msra.mxu0 0
      %258 = vmatpush.bf16.msra.mxu0 0
      %259 = vmatpush.bf16.msra.mxu0 0
      %260 = vmatpush.bf16.msra.mxu0 0
      %261 = vmatpush.bf16.msra.mxu0 0
      %262 = vmatpush.bf16.msra.mxu0 %v250
      %263 = vmatmul.bf16.gmra.mxu0 %v253
      %v264 = vpop.f32.mrf.mxu0
      %v265 = vadd.f32 0.0, %v264
      %v266 = vpop.f32.mrf.mxu0
      %v267 = vadd.f32 0.0, %v266
      %268 = vdwg.mxu0
      %v269 = vpack.c.bf16 %v267, %v265
      %v271 = vsel %vm251, %v247, 0
      %273 = vmatpush.bf16.msra.mxu0 0
      %274 = vmatpush.bf16.msra.mxu0 0
      %275 = vmatpush.bf16.msra.mxu0 0
      %276 = vmatpush.bf16.msra.mxu0 0
      %277 = vmatpush.bf16.msra.mxu0 0
      %278 = vmatpush.bf16.msra.mxu0 0
      %279 = vmatpush.bf16.msra.mxu0 0
      %280 = vmatpush.bf16.msra.mxu0 %v250
      %281 = vmatmul.bf16.gmra.mxu0 %v271
      %v282 = vpop.f32.mrf.mxu0
      %v283 = vadd.f32 0.0, %v282
      %v284 = vpop.f32.mrf.mxu0
      %v285 = vadd.f32 0.0, %v284
      %286 = vdwg.mxu0
      %v287 = vpack.c.bf16 %v285, %v283
      %v288 = vld [vmem:[%s1] sm:$0xf]
      %v289 = vld [vmem:[%s1 + $0x4] sm:$0xf]
      %v290 = vld [vmem:[%s1 + $0x8] sm:$0xf]
      %v291 = vld [vmem:[%s1 + $0xc] sm:$0xf]
      %v292 = vld [vmem:[%s1 + $0x10] sm:$0xf]
      %v293 = vld [vmem:[%s1 + $0x14] sm:$0xf]
      %v294 = vld [vmem:[%s1 + $0x18] sm:$0xf]
      %v295 = vld [vmem:[%s1 + $0x1c] sm:$0xf]
      %s296 = scalar_lea.vmem %s1, 32
      %v297 = vld [vmem:[%s296] sm:$0xf]
      %v298 = vld [vmem:[%s296 + $0x4] sm:$0xf]
      %v299 = vld [vmem:[%s296 + $0x8] sm:$0xf]
      %v300 = vld [vmem:[%s296 + $0xc] sm:$0xf]
      %v301 = vld [vmem:[%s296 + $0x10] sm:$0xf]
      %v302 = vld [vmem:[%s296 + $0x14] sm:$0xf]
      %v303 = vld [vmem:[%s296 + $0x18] sm:$0xf]
      %v304 = vld [vmem:[%s296 + $0x1c] sm:$0xf]
      %v313 = vunpack.c.l.b16 %v297
      %v314 = vunpack.c.l.b16 %v298
      %v315 = vunpack.c.l.b16 %v299
      %v316 = vunpack.c.l.b16 %v300
      %v317 = vunpack.c.l.b16 %v301
      %v318 = vunpack.c.l.b16 %v302
      %v319 = vunpack.c.l.b16 %v303
      %v320 = vunpack.c.l.b16 %v304
      %v321 = vpack.c.b16 %v314, %v313
      %v322 = vpack.c.b16 %v316, %v315
      %v323 = vpack.c.b16 %v318, %v317
      %v324 = vpack.c.b16 %v320, %v319
      %vm329 = vcmask 523264
      %v331 = vsel %vm329, %v250, 0
      %333 = vmatpush.bf16.msra.mxu0 0
      %334 = vmatpush.bf16.msra.mxu0 0
      %335 = vmatpush.bf16.msra.mxu0 0
      %336 = vmatpush.bf16.msra.mxu0 0
      %337 = vmatpush.bf16.msra.mxu0 %v324
      %338 = vmatpush.bf16.msra.mxu0 %v323
      %339 = vmatpush.bf16.msra.mxu0 %v322
      %340 = vmatpush.bf16.msra.mxu0 %v321
      %341 = vmatmul.bf16.gmra.mxu0 %v331
      %v342 = vpop.f32.mrf.mxu0
      %v343 = vadd.f32 0.0, %v342
      %v344 = vpop.f32.mrf.mxu0
      %v345 = vadd.f32 0.0, %v344
      %346 = vdwg.mxu0
      %v355 = vunpack.c.l.b16 %v288
      %v356 = vunpack.c.l.b16 %v289
      %v357 = vunpack.c.l.b16 %v290
      %v358 = vunpack.c.l.b16 %v291
      %v359 = vunpack.c.l.b16 %v292
      %v360 = vunpack.c.l.b16 %v293
      %v361 = vunpack.c.l.b16 %v294
      %v362 = vunpack.c.l.b16 %v295
      %v363 = vpack.c.b16 %v356, %v355
      %v364 = vpack.c.b16 %v358, %v357
      %v365 = vpack.c.b16 %v360, %v359
      %v366 = vpack.c.b16 %v362, %v361
      %v372 = vsel %vm329, %v269, 0
      %374 = vmatpush.bf16.msra.mxu0 0
      %375 = vmatpush.bf16.msra.mxu0 0
      %376 = vmatpush.bf16.msra.mxu0 0
      %377 = vmatpush.bf16.msra.mxu0 0
      %378 = vmatpush.bf16.msra.mxu0 %v366
      %379 = vmatpush.bf16.msra.mxu0 %v365
      %380 = vmatpush.bf16.msra.mxu0 %v364
      %381 = vmatpush.bf16.msra.mxu0 %v363
      %382 = vmatmul.bf16.gmra.mxu0 %v372
      %v383 = vpop.f32.mrf.mxu0
      %v384 = vadd.f32 %v343, %v383
      %v385 = vpop.f32.mrf.mxu0
      %v386 = vadd.f32 %v345, %v385
      %387 = vdwg.mxu0
      %s388 = scalar_lea.vmem %s1, 64
      %v389 = vld [vmem:[%s388] sm:$0xf]
      %v390 = vld [vmem:[%s388 + $0x4] sm:$0xf]
      %v391 = vld [vmem:[%s388 + $0x8] sm:$0xf]
      %v392 = vld [vmem:[%s388 + $0xc] sm:$0xf]
      %v393 = vld [vmem:[%s388 + $0x10] sm:$0xf]
      %v394 = vld [vmem:[%s388 + $0x14] sm:$0xf]
      %v395 = vld [vmem:[%s388 + $0x18] sm:$0xf]
      %v396 = vld [vmem:[%s388 + $0x1c] sm:$0xf]
      %v405 = vunpack.c.l.b16 %v389
      %v406 = vunpack.c.l.b16 %v390
      %v407 = vunpack.c.l.b16 %v391
      %v408 = vunpack.c.l.b16 %v392
      %v409 = vunpack.c.l.b16 %v393
      %v410 = vunpack.c.l.b16 %v394
      %v411 = vunpack.c.l.b16 %v395
      %v412 = vunpack.c.l.b16 %v396
      %v413 = vpack.c.b16 %v406, %v405
      %v414 = vpack.c.b16 %v408, %v407
      %v415 = vpack.c.b16 %v410, %v409
      %v416 = vpack.c.b16 %v412, %v411
      %v422 = vsel %vm329, %v287, 0
      %424 = vmatpush.bf16.msra.mxu0 0
      %425 = vmatpush.bf16.msra.mxu0 0
      %426 = vmatpush.bf16.msra.mxu0 0
      %427 = vmatpush.bf16.msra.mxu0 0
      %428 = vmatpush.bf16.msra.mxu0 %v416
      %429 = vmatpush.bf16.msra.mxu0 %v415
      %430 = vmatpush.bf16.msra.mxu0 %v414
      %431 = vmatpush.bf16.msra.mxu0 %v413
      %432 = vmatmul.bf16.gmra.mxu0 %v422
      %v433 = vpop.f32.mrf.mxu0
      %v434 = vadd.f32 0.0, %v433
      %v435 = vpop.f32.mrf.mxu0
      %v436 = vadd.f32 0.0, %v435
      %437 = vdwg.mxu0
      %v438 = vadd.f32 %v384, %v434
      %v439 = vadd.f32 %v386, %v436
      %v440 = vld [vmem:[%s3] sm:$0x1]
      %v442 = vperm.slane %v440, 0
      %v444 = vadd.f32 %v438, %v442
      %v445 = vadd.f32 %v439, %v442
      %v446 = vmax.f32 %v444, 0.0
      %v447 = vmax.f32 %v445, 0.0
      %v448 = vpack.c.bf16 %v447, %v446
      %449 = vmatpush.bf16.msra.mxu0 0
      %450 = vmatpush.bf16.msra.mxu0 0
      %451 = vmatpush.bf16.msra.mxu0 0
      %452 = vmatpush.bf16.msra.mxu0 0
      %453 = vmatpush.bf16.msra.mxu0 0
      %454 = vmatpush.bf16.msra.mxu0 0
      %455 = vmatpush.bf16.msra.mxu0 0
      %456 = vmatpush.bf16.msra.mxu0 %v448
      %457 = vmatmul.bf16.gmra.mxu0 %v253
      %v458 = vpop.f32.mrf.mxu0
      %v459 = vadd.f32 0.0, %v458
      %v460 = vpop.f32.mrf.mxu0
      %v461 = vadd.f32 0.0, %v460
      %462 = vdwg.mxu0
      %v463 = vpack.c.bf16 %v461, %v459
      %464 = vmatpush.bf16.msra.mxu0 0
      %465 = vmatpush.bf16.msra.mxu0 0
      %466 = vmatpush.bf16.msra.mxu0 0
      %467 = vmatpush.bf16.msra.mxu0 0
      %468 = vmatpush.bf16.msra.mxu0 0
      %469 = vmatpush.bf16.msra.mxu0 0
      %470 = vmatpush.bf16.msra.mxu0 0
      %471 = vmatpush.bf16.msra.mxu0 %v448
      %472 = vmatmul.bf16.gmra.mxu0 %v271
      %v473 = vpop.f32.mrf.mxu0
      %v474 = vadd.f32 0.0, %v473
      %v475 = vpop.f32.mrf.mxu0
      %v476 = vadd.f32 0.0, %v475
      %477 = vdwg.mxu0
      %v478 = vpack.c.bf16 %v476, %v474
      %v479 = vld [vmem:[%s2] sm:$0xf]
      %v480 = vld [vmem:[%s2 + $0x4] sm:$0xf]
      %v481 = vld [vmem:[%s2 + $0x8] sm:$0xf]
      %v482 = vld [vmem:[%s2 + $0xc] sm:$0xf]
      %v483 = vld [vmem:[%s2 + $0x10] sm:$0xf]
      %v484 = vld [vmem:[%s2 + $0x14] sm:$0xf]
      %v485 = vld [vmem:[%s2 + $0x18] sm:$0xf]
      %v486 = vld [vmem:[%s2 + $0x1c] sm:$0xf]
      %v487 = vld [vmem:[%s2 + $0x20] sm:$0xf]
      %v488 = vld [vmem:[%s2 + $0x24] sm:$0xf]
      %v489 = vld [vmem:[%s2 + $0x28] sm:$0xf]
      %v490 = vld [vmem:[%s2 + $0x2c] sm:$0xf]
      %v491 = vld [vmem:[%s2 + $0x30] sm:$0xf]
      %v492 = vld [vmem:[%s2 + $0x34] sm:$0xf]
      %v493 = vld [vmem:[%s2 + $0x38] sm:$0xf]
      %v494 = vld [vmem:[%s2 + $0x3c] sm:$0xf]
      %s495 = scalar_lea.vmem %s2, 64
      %v496 = vld [vmem:[%s495] sm:$0xf]
      %v497 = vld [vmem:[%s495 + $0x4] sm:$0xf]
      %v498 = vld [vmem:[%s495 + $0x8] sm:$0xf]
      %v499 = vld [vmem:[%s495 + $0xc] sm:$0xf]
      %v500 = vld [vmem:[%s495 + $0x10] sm:$0xf]
      %v501 = vld [vmem:[%s495 + $0x14] sm:$0xf]
      %v502 = vld [vmem:[%s495 + $0x18] sm:$0xf]
      %v503 = vld [vmem:[%s495 + $0x1c] sm:$0xf]
      %v504 = vld [vmem:[%s495 + $0x20] sm:$0xf]
      %v505 = vld [vmem:[%s495 + $0x24] sm:$0xf]
      %v506 = vld [vmem:[%s495 + $0x28] sm:$0xf]
      %v507 = vld [vmem:[%s495 + $0x2c] sm:$0xf]
      %v508 = vld [vmem:[%s495 + $0x30] sm:$0xf]
      %v509 = vld [vmem:[%s495 + $0x34] sm:$0xf]
      %v510 = vld [vmem:[%s495 + $0x38] sm:$0xf]
      %v511 = vld [vmem:[%s495 + $0x3c] sm:$0xf]
      %v528 = vunpack.c.l.b16 %v496
      %v529 = vunpack.c.l.b16 %v497
      %v530 = vunpack.c.l.b16 %v498
      %v531 = vunpack.c.l.b16 %v499
      %v532 = vunpack.c.l.b16 %v500
      %v533 = vunpack.c.l.b16 %v501
      %v534 = vunpack.c.l.b16 %v502
      %v535 = vunpack.c.l.b16 %v503
      %v536 = vunpack.c.l.b16 %v504
      %v537 = vunpack.c.l.b16 %v505
      %v538 = vunpack.c.l.b16 %v506
      %v539 = vunpack.c.l.b16 %v507
      %v540 = vunpack.c.l.b16 %v508
      %v541 = vunpack.c.l.b16 %v509
      %v542 = vunpack.c.l.b16 %v510
      %v543 = vunpack.c.l.b16 %v511
      %v544 = vpack.c.b16 %v529, %v528
      %v545 = vpack.c.b16 %v531, %v530
      %v546 = vpack.c.b16 %v533, %v532
      %v547 = vpack.c.b16 %v535, %v534
      %v548 = vpack.c.b16 %v537, %v536
      %v549 = vpack.c.b16 %v539, %v538
      %v550 = vpack.c.b16 %v541, %v540
      %v551 = vpack.c.b16 %v543, %v542
      %560 = vmatpush.bf16.msra.mxu0 %v551
      %561 = vmatpush.bf16.msra.mxu0 %v550
      %562 = vmatpush.bf16.msra.mxu0 %v549
      %563 = vmatpush.bf16.msra.mxu0 %v548
      %564 = vmatpush.bf16.msra.mxu0 %v547
      %565 = vmatpush.bf16.msra.mxu0 %v546
      %566 = vmatpush.bf16.msra.mxu0 %v545
      %567 = vmatpush.bf16.msra.mxu0 %v544
      %568 = vmatmul.bf16.gmra.mxu0 %v448
      %v569 = vpop.f32.mrf.mxu0
      %v570 = vadd.f32 0.0, %v569
      %v571 = vpop.f32.mrf.mxu0
      %v572 = vadd.f32 0.0, %v571
      %573 = vdwg.mxu0
      %v590 = vunpack.c.l.b16 %v479
      %v591 = vunpack.c.l.b16 %v480
      %v592 = vunpack.c.l.b16 %v481
      %v593 = vunpack.c.l.b16 %v482
      %v594 = vunpack.c.l.b16 %v483
      %v595 = vunpack.c.l.b16 %v484
      %v596 = vunpack.c.l.b16 %v485
      %v597 = vunpack.c.l.b16 %v486
      %v598 = vunpack.c.l.b16 %v487
      %v599 = vunpack.c.l.b16 %v488
      %v600 = vunpack.c.l.b16 %v489
      %v601 = vunpack.c.l.b16 %v490
      %v602 = vunpack.c.l.b16 %v491
      %v603 = vunpack.c.l.b16 %v492
      %v604 = vunpack.c.l.b16 %v493
      %v605 = vunpack.c.l.b16 %v494
      %v606 = vpack.c.b16 %v591, %v590
      %v607 = vpack.c.b16 %v593, %v592
      %v608 = vpack.c.b16 %v595, %v594
      %v609 = vpack.c.b16 %v597, %v596
      %v610 = vpack.c.b16 %v599, %v598
      %v611 = vpack.c.b16 %v601, %v600
      %v612 = vpack.c.b16 %v603, %v602
      %v613 = vpack.c.b16 %v605, %v604
      %622 = vmatpush.bf16.msra.mxu0 %v613
      %623 = vmatpush.bf16.msra.mxu0 %v612
      %624 = vmatpush.bf16.msra.mxu0 %v611
      %625 = vmatpush.bf16.msra.mxu0 %v610
      %626 = vmatpush.bf16.msra.mxu0 %v609
      %627 = vmatpush.bf16.msra.mxu0 %v608
      %628 = vmatpush.bf16.msra.mxu0 %v607
      %629 = vmatpush.bf16.msra.mxu0 %v606
      %630 = vmatmul.bf16.gmra.mxu0 %v463
      %v631 = vpop.f32.mrf.mxu0
      %v632 = vadd.f32 %v570, %v631
      %v633 = vpop.f32.mrf.mxu0
      %v634 = vadd.f32 %v572, %v633
      %635 = vdwg.mxu0
      %s636 = scalar_lea.vmem %s2, 128
      %v637 = vld [vmem:[%s636] sm:$0xf]
      %v638 = vld [vmem:[%s636 + $0x4] sm:$0xf]
      %v639 = vld [vmem:[%s636 + $0x8] sm:$0xf]
      %v640 = vld [vmem:[%s636 + $0xc] sm:$0xf]
      %v641 = vld [vmem:[%s636 + $0x10] sm:$0xf]
      %v642 = vld [vmem:[%s636 + $0x14] sm:$0xf]
      %v643 = vld [vmem:[%s636 + $0x18] sm:$0xf]
      %v644 = vld [vmem:[%s636 + $0x1c] sm:$0xf]
      %v645 = vld [vmem:[%s636 + $0x20] sm:$0xf]
      %v646 = vld [vmem:[%s636 + $0x24] sm:$0xf]
      %v647 = vld [vmem:[%s636 + $0x28] sm:$0xf]
      %v648 = vld [vmem:[%s636 + $0x2c] sm:$0xf]
      %v649 = vld [vmem:[%s636 + $0x30] sm:$0xf]
      %v650 = vld [vmem:[%s636 + $0x34] sm:$0xf]
      %v651 = vld [vmem:[%s636 + $0x38] sm:$0xf]
      %v652 = vld [vmem:[%s636 + $0x3c] sm:$0xf]
      %v669 = vunpack.c.l.b16 %v637
      %v670 = vunpack.c.l.b16 %v638
      %v671 = vunpack.c.l.b16 %v639
      %v672 = vunpack.c.l.b16 %v640
      %v673 = vunpack.c.l.b16 %v641
      %v674 = vunpack.c.l.b16 %v642
      %v675 = vunpack.c.l.b16 %v643
      %v676 = vunpack.c.l.b16 %v644
      %v677 = vunpack.c.l.b16 %v645
      %v678 = vunpack.c.l.b16 %v646
      %v679 = vunpack.c.l.b16 %v647
      %v680 = vunpack.c.l.b16 %v648
      %v681 = vunpack.c.l.b16 %v649
      %v682 = vunpack.c.l.b16 %v650
      %v683 = vunpack.c.l.b16 %v651
      %v684 = vunpack.c.l.b16 %v652
      %v685 = vpack.c.b16 %v670, %v669
      %v686 = vpack.c.b16 %v672, %v671
      %v687 = vpack.c.b16 %v674, %v673
      %v688 = vpack.c.b16 %v676, %v675
      %v689 = vpack.c.b16 %v678, %v677
      %v690 = vpack.c.b16 %v680, %v679
      %v691 = vpack.c.b16 %v682, %v681
      %v692 = vpack.c.b16 %v684, %v683
      %701 = vmatpush.bf16.msra.mxu0 %v692
      %702 = vmatpush.bf16.msra.mxu0 %v691
      %703 = vmatpush.bf16.msra.mxu0 %v690
      %704 = vmatpush.bf16.msra.mxu0 %v689
      %705 = vmatpush.bf16.msra.mxu0 %v688
      %706 = vmatpush.bf16.msra.mxu0 %v687
      %707 = vmatpush.bf16.msra.mxu0 %v686
      %708 = vmatpush.bf16.msra.mxu0 %v685
      %709 = vmatmul.bf16.gmra.mxu0 %v478
      %v710 = vpop.f32.mrf.mxu0
      %v711 = vadd.f32 0.0, %v710
      %v712 = vpop.f32.mrf.mxu0
      %v713 = vadd.f32 0.0, %v712
      %714 = vdwg.mxu0
      %v715 = vadd.f32 %v632, %v711
      %v716 = vadd.f32 %v634, %v713
      %v717 = vld [vmem:[%s4] sm:$0x1]
      %v719 = vperm.slane %v717, 0
      %v721 = vadd.f32 %v715, %v719
      %v722 = vadd.f32 %v716, %v719
      %v723 = vmax.f32 %v721, 0.0
      %v724 = vmax.f32 %v722, 0.0
      %725 = vst [vmem:[%s226] sm:$0xff] %v723
      %726 = vst [vmem:[%s226 + $0x8] sm:$0xff] %v724
      %s727 = smul.u32 2, %s16
      %p728 = scmp.lt.s32.totalorder %s727, 3
      %s729 = scalar_select %p728, %s727, 3
      %s730 = smul.addr %s729, 8
      %s731 = scalar_lea.vmem %s5, %s730
      // Predicated region
      $region41: #{network_partial_forward.1} parent=39 // pred_check
        %p732 = pneg %p144
      $region42: #{network_partial_forward.1} parent=39 // pred_check_branch
        %734 = sbr.rel (%p732) target = $region44
      $region43: #{network_partial_forward.1} parent=39 // pred_region
        %s735 = smul.u32 2, %s16
      $region44: #{network_partial_forward.1} parent=39 // pred_fallthru
        _
    $region40: #{network_partial_forward.1} parent=5 // pred_fallthru
      _
    %p736 = scmp.le.s32.totalorder 2, %s11
    // Predicated region
    $region45: #{network_partial_forward.1} parent=5 // pred_check
      %p737 = pneg %p736
    $region46: #{network_partial_forward.1} parent=5 // pred_check_branch
      %739 = sbr.rel (%p737) target = $region48
    $region47: #{network_partial_forward.1} parent=5 // pred_region
      %s740 = ssub.s32 %s11, 2
      // Predicated region
      $region49: #{network_partial_forward.1} parent=47 // pred_check
        %p741 = pneg %p150
      $region50: #{network_partial_forward.1} parent=47 // pred_check_branch
        %743 = sbr.rel (%p741) target = $region52
      $region51: #{network_partial_forward.1} parent=47 // pred_region
        %s744 = smul.u32 2, %s17
        %p745 = scmp.lt.s32.totalorder %s744, 3
        %s746 = scalar_select %p745, %s744, 3
        %s747 = smul.addr %s746, 8
        %s748 = scalar_lea.vmem %s5, %s747
      $region52: #{network_partial_forward.1} parent=47 // pred_fallthru
        _
    $region48: #{network_partial_forward.1} parent=5 // pred_fallthru
      _
  $region6: #{network_partial_forward.1} parent=0 // loop_footer
    %s15 = sadd.s32 1, %s11
  $region7: #{network_partial_forward.1} parent=0 // loop_footer_branch
    %10 = sbr.rel target = $region3
  $region8: #{network_partial_forward.1} parent=0 // loop_exit
    _

</llo_original>
